<compile_context>
chip_gen: v5e
topology: v5e:2x2
jax: 0.10.0
libtpu: 0.0.40
codegen_flags: <defaults>
</compile_context>

<pallas_src>
import functools

import jax
import jax.numpy as jnp
from jax.experimental import pallas as pl
from jax.experimental.pallas import tpu as pltpu

_EPS = 1e-5      # PyTorch BatchNorm1d default
_SLOPE = 0.01    # PyTorch LeakyReLU default negative_slope
_LANES = 128     # lane width for the lane-dense output head


def _round_up(x, m):
    return (x + m - 1) // m * m


def _mm(a, b, dtype):
    return jnp.dot(a.astype(dtype), b.astype(dtype),
                   preferred_element_type=jnp.float32)


def _bn_lrelu(h, mean, var, gamma, beta):
    hn = (h - mean) * (jax.lax.rsqrt(var + _EPS) * gamma) + beta
    return jnp.where(hn > 0, hn, _SLOPE * hn)


def _softmax_store(logits, out_ref):
    m = jnp.max(logits, axis=-1, keepdims=True)
    e = jnp.exp(logits - m)
    s = jnp.sum(e, axis=-1, keepdims=True)
    inv = pl.reciprocal(s, approx=True)        # EUP slot, off the VALU
    inv = inv * (2.0 - s * inv)                # one Newton step -> full f32 accuracy
    out_ref[...] = (e * inv).astype(out_ref.dtype)


# ---------------------------------------------------------------------------
# Single-tile fast path: whole batch in one grid step, stats computed inline.
# ---------------------------------------------------------------------------
def _fbatch_single_tile_kernel(x_ref, w1_ref, w2_ref, w3_ref, bn_ref, b3_ref,
                               out_ref, *, n_valid, matmul_dtype):
    tile_n = x_ref.shape[0]
    inv_n = 1.0 / float(n_valid)
    # Validity-mask row: 1.0 for real batch rows, 0.0 for padding rows.
    row_ids = jax.lax.broadcasted_iota(jnp.int32, (1, tile_n), 1)
    row_mask = (row_ids < n_valid).astype(jnp.float32)               # (1, TILE_N)

    def stats(h):
        s = jnp.dot(row_mask, h, preferred_element_type=jnp.float32)
        q = jnp.dot(row_mask, h * h, preferred_element_type=jnp.float32)
        mean = s * inv_n
        var = q * inv_n - mean * mean
        return mean, var

    x = x_ref[...].astype(jnp.float32)
    # Linear biases omitted: training-mode BN subtracts the batch mean immediately
    # after, so "+ b" cancels exactly.
    h1 = _mm(x, w1_ref[...], matmul_dtype)                           # (TILE_N, H)
    m1, v1 = stats(h1)
    h1n = _bn_lrelu(h1, m1, v1, bn_ref[0:1, :], bn_ref[1:2, :])
    # TODO(synk): torch training-mode Dropout would be applied here (identity).
    h2 = _mm(h1n, w2_ref[...], matmul_dtype)                         # (TILE_N, H)
    m2, v2 = stats(h2)
    h2n = _bn_lrelu(h2, m2, v2, bn_ref[2:3, :], bn_ref[3:4, :])
    # TODO(synk): torch training-mode Dropout would be applied here (identity).
    logits = _mm(h2n, w3_ref[...], matmul_dtype) + b3_ref[...]       # (TILE_N, 128)
    _softmax_store(logits, out_ref)


# ---------------------------------------------------------------------------
# Multi-tile path: 3-pass grid with full-batch stats in VMEM scratch.
# ---------------------------------------------------------------------------
def _fbatch_multi_tile_kernel(x_ref, w1_ref, w2_ref, w3_ref, bn_ref, b3_ref,
                              out_ref,
                              sum1, sumsq1, sum2, sumsq2,
                              *, n_valid, tile_n, matmul_dtype):
    p = pl.program_id(0)   # pass: 0 = layer-1 stats, 1 = layer-2 stats, 2 = finalize
    t = pl.program_id(1)   # batch tile

    inv_n = 1.0 / float(n_valid)

    @pl.when(jnp.logical_and(p == 0, t == 0))
    def _init():
        sum1[...] = jnp.zeros_like(sum1)
        sumsq1[...] = jnp.zeros_like(sumsq1)
        sum2[...] = jnp.zeros_like(sum2)
        sumsq2[...] = jnp.zeros_like(sumsq2)

    # Validity-mask row: 1.0 for real batch rows, 0.0 for padding rows of this tile.
    row_ids = t * tile_n + jax.lax.broadcasted_iota(jnp.int32, (1, tile_n), 1)
    row_mask = (row_ids < n_valid).astype(jnp.float32)               # (1, TILE_N)

    x = x_ref[...].astype(jnp.float32)
    # Layer-1 pre-activation (bias cancelled by the batch-mean subtraction below).
    h1 = _mm(x, w1_ref[...], matmul_dtype)                           # (TILE_N, H)

    def layer2_pre():
        mean1 = sum1[...] * inv_n
        var1 = sumsq1[...] * inv_n - mean1 * mean1
        h1n = _bn_lrelu(h1, mean1, var1, bn_ref[0:1, :], bn_ref[1:2, :])
        # TODO(synk): torch training-mode Dropout would be applied here (identity).
        return _mm(h1n, w2_ref[...], matmul_dtype)                   # (TILE_N, H)

    @pl.when(p == 0)
    def _pass0():
        # Masked per-feature column sums on the MXU (keeps the XLU free).
        sum1[...] += jnp.dot(row_mask, h1, preferred_element_type=jnp.float32)
        sumsq1[...] += jnp.dot(row_mask, h1 * h1,
                               preferred_element_type=jnp.float32)

    @pl.when(p == 1)
    def _pass1():
        h2 = layer2_pre()
        sum2[...] += jnp.dot(row_mask, h2, preferred_element_type=jnp.float32)
        sumsq2[...] += jnp.dot(row_mask, h2 * h2,
                               preferred_element_type=jnp.float32)

    @pl.when(p == 2)
    def _pass2():
        h2 = layer2_pre()
        mean2 = sum2[...] * inv_n
        var2 = sumsq2[...] * inv_n - mean2 * mean2
        h2n = _bn_lrelu(h2, mean2, var2, bn_ref[2:3, :], bn_ref[3:4, :])
        # TODO(synk): torch training-mode Dropout would be applied here (identity).
        logits = _mm(h2n, w3_ref[...], matmul_dtype) + b3_ref[...]   # (TILE_N, 128)
        _softmax_store(logits, out_ref)


def fbatch_forward(x, params, *, tile_n=512, matmul_dtype=jnp.float32):
    """Forward pass of FBatch. params = (w1,b1,g1,be1,w2,b2,g2,be2,w3,b3)."""
    (w1, b1, g1, be1, w2, b2, g2, be2, w3, b3) = params
    del b1, b2  # algebraically cancelled by training-mode BatchNorm mean subtraction

    n, z_dim = x.shape
    hidden = w1.shape[1]
    batch_dim = w3.shape[1]
    out_lanes = _round_up(max(batch_dim, 1), _LANES)

    tile_n = _round_up(min(tile_n, _round_up(n, 8)), 8)
    n_pad = _round_up(n, tile_n)
    num_tiles = n_pad // tile_n
    if n_pad != n:
        x = jnp.pad(x, ((0, n_pad - n), (0, 0)))

    # Pack the tiny per-layer BN vectors: 4 small DMAs -> 1 operand.
    bn_params = jnp.concatenate([g1, be1, g2, be2], axis=0)          # (4, H)
    # Lane-dense output head: pad W3/b3 to the full lane width; -1e30 on pad lanes so
    # the softmax ignores them.
    w3p = jnp.pad(w3, ((0, 0), (0, out_lanes - batch_dim)))
    b3p = jnp.pad(b3, ((0, 0), (0, out_lanes - batch_dim)),
                  constant_values=-1e30)

    if num_tiles == 1:
        # Whole batch in one tile: single grid step, stats computed inline, every
        # matmul done exactly once (no recompute passes, minimal pipeline overhead).
        const1 = lambda i: (0, 0)
        kernel = functools.partial(_fbatch_single_tile_kernel, n_valid=n,
                                   matmul_dtype=matmul_dtype)
        out = pl.pallas_call(
            kernel,
            out_shape=jax.ShapeDtypeStruct((n_pad, out_lanes), jnp.float32),
            grid_spec=pltpu.PrefetchScalarGridSpec(
                num_scalar_prefetch=0,
                grid=(1,),
                in_specs=[
                    pl.BlockSpec((n_pad, z_dim), const1),            # x
                    pl.BlockSpec((z_dim, hidden), const1),           # W1
                    pl.BlockSpec((hidden, hidden), const1),          # W2
                    pl.BlockSpec((hidden, out_lanes), const1),       # W3 (lane-padded)
                    pl.BlockSpec((4, hidden), const1),               # g1, be1, g2, be2
                    pl.BlockSpec((1, out_lanes), const1),            # b3 (lane-padded)
                ],
                out_specs=pl.BlockSpec((n_pad, out_lanes), const1),
            ),
            compiler_params=pltpu.CompilerParams(
                dimension_semantics=("arbitrary",)),
        )(x, w1, w2, w3p, bn_params, b3p)
        return out[:n, :batch_dim]

    const = lambda p, t: (0, 0)   # weights / params stay resident across the grid
    kernel = functools.partial(_fbatch_multi_tile_kernel, n_valid=n, tile_n=tile_n,
                               matmul_dtype=matmul_dtype)

    out = pl.pallas_call(
        kernel,
        out_shape=jax.ShapeDtypeStruct((n_pad, out_lanes), jnp.float32),
        grid_spec=pltpu.PrefetchScalarGridSpec(
            num_scalar_prefetch=0,
            grid=(3, num_tiles),                                     # (pass, batch tile)
            in_specs=[
                pl.BlockSpec((tile_n, z_dim), lambda p, t: (t, 0)),  # x (pipelined)
                pl.BlockSpec((z_dim, hidden), const),                # W1
                pl.BlockSpec((hidden, hidden), const),               # W2
                pl.BlockSpec((hidden, out_lanes), const),            # W3 (lane-padded)
                pl.BlockSpec((4, hidden), const),                    # g1, be1, g2, be2
                pl.BlockSpec((1, out_lanes), const),                 # b3 (lane-padded)
            ],
            # Output block index only advances on the finalize pass (p == 2); during the
            # stats passes it stays at 0 so nothing is written back to HBM.
            out_specs=pl.BlockSpec((tile_n, out_lanes),
                                   lambda p, t: (t * (p // 2), 0)),
            scratch_shapes=[pltpu.VMEM((1, hidden), jnp.float32)] * 4,
        ),
        compiler_params=pltpu.CompilerParams(
            dimension_semantics=("arbitrary", "arbitrary")),
    )(x, w1, w2, w3p, bn_params, b3p)

    return out[:n, :batch_dim]


def init_params(key, z_dim, hidden_dim, batch_dim):
    """Deterministic PyTorch-style Linear init (uniform(+-1/sqrt(fan_in))).
    BatchNorm: gamma=1, beta=0. Weights stored transposed as (in, out)."""
    ks = jax.random.split(key, 6)

    def linear(kw, kb, fan_in, fan_out):
        bound = 1.0 / (fan_in ** 0.5)
        w = jax.random.uniform(kw, (fan_in, fan_out), jnp.float32, -bound, bound)
        b = jax.random.uniform(kb, (1, fan_out), jnp.float32, -bound, bound)
        return w, b

    w1, b1 = linear(ks[0], ks[1], z_dim, hidden_dim)
    w2, b2 = linear(ks[2], ks[3], hidden_dim, hidden_dim)
    w3, b3 = linear(ks[4], ks[5], hidden_dim, batch_dim)
    g1 = jnp.ones((1, hidden_dim), jnp.float32)
    be1 = jnp.zeros((1, hidden_dim), jnp.float32)
    g2 = jnp.ones((1, hidden_dim), jnp.float32)
    be2 = jnp.zeros((1, hidden_dim), jnp.float32)
    return (w1, b1, g1, be1, w2, b2, g2, be2, w3, b3)


def reference_forward(x, params):
    """Pure-JAX reference with identical semantics (keeps the b1/b2 adds so the
    bias-cancellation in the kernel is validated)."""
    (w1, b1, g1, be1, w2, b2, g2, be2, w3, b3) = params

    def bn_lrelu(h, gamma, beta):
        mean = jnp.mean(h, axis=0, keepdims=True)
        var = jnp.mean((h - mean) ** 2, axis=0, keepdims=True)
        hn = (h - mean) / jnp.sqrt(var + _EPS) * gamma + beta
        return jnp.where(hn > 0, hn, _SLOPE * hn)

    h = bn_lrelu(x @ w1 + b1, g1, be1)
    h = bn_lrelu(h @ w2 + b2, g2, be2)
    return jax.nn.softmax(h @ w3 + b3, axis=-1)


if __name__ == "__main__":
    # FBatch(hidden_dim=32, batch_dim=4, z_dim=16, drop=0.1); input: hidden in (N, z_dim)
    N, Z_DIM, HIDDEN_DIM, BATCH_DIM = 8, 16, 32, 4

    key = jax.random.PRNGKey(0)
    kx, kp = jax.random.split(key)
    x = jax.random.normal(kx, (N, Z_DIM), jnp.float32)
    params = init_params(kp, Z_DIM, HIDDEN_DIM, BATCH_DIM)

    # Single-tile fast path.
    out = jax.block_until_ready(fbatch_forward(x, params))
    ref = reference_forward(x, params)
    assert out.shape == (N, BATCH_DIM)
    assert jnp.allclose(jnp.sum(out, axis=-1), 1.0, atol=1e-5)
    assert jnp.allclose(out, ref, atol=1e-5, rtol=1e-4)

    # Multi-tile path with batch padding (N not a tile multiple).
    N2 = 20
    x2 = jax.random.normal(jax.random.PRNGKey(1), (N2, Z_DIM), jnp.float32)
    out2 = jax.block_until_ready(fbatch_forward(x2, params, tile_n=8))
    ref2 = reference_forward(x2, params)
    assert out2.shape == (N2, BATCH_DIM)
    assert jnp.allclose(jnp.sum(out2, axis=-1), 1.0, atol=1e-5)
    assert jnp.allclose(out2, ref2, atol=1e-5, rtol=1e-4)

    print("KERNEL_OK")
</pallas_src>

<mosaic_0001>
module attributes {stable_mosaic.version = 11 : i64} {
  func.func @_fbatch_single_tile_kernel(%arg0: i32, %arg1: memref<8x16xf32, #tpu.memory_space<vmem>>, %arg2: memref<16x32xf32, #tpu.memory_space<vmem>>, %arg3: memref<32x32xf32, #tpu.memory_space<vmem>>, %arg4: memref<32x128xf32, #tpu.memory_space<vmem>>, %arg5: memref<4x32xf32, #tpu.memory_space<vmem>>, %arg6: memref<1x128xf32, #tpu.memory_space<vmem>>, %arg7: memref<8x128xf32, #tpu.memory_space<vmem>>) attributes {dimension_semantics = [#tpu.dimension_semantics<arbitrary>], iteration_bounds = array<i64: 1>, scalar_prefetch = 0 : i64, scratch_operands = 0 : i64, tpu.core_type = #tpu.core_type<tc>, window_params = [{pipeline_mode = #tpu.pipeline_mode<synchronous>, transform_indices = @transform_0, window_bounds = array<i64: 8, 16>}, {pipeline_mode = #tpu.pipeline_mode<synchronous>, transform_indices = @transform_1, window_bounds = array<i64: 16, 32>}, {pipeline_mode = #tpu.pipeline_mode<synchronous>, transform_indices = @transform_2, window_bounds = array<i64: 32, 32>}, {pipeline_mode = #tpu.pipeline_mode<synchronous>, transform_indices = @transform_3, window_bounds = array<i64: 32, 128>}, {pipeline_mode = #tpu.pipeline_mode<synchronous>, transform_indices = @transform_4, window_bounds = array<i64: 4, 32>}, {pipeline_mode = #tpu.pipeline_mode<synchronous>, transform_indices = @transform_5, window_bounds = array<i64: 1, 128>}, {pipeline_mode = #tpu.pipeline_mode<synchronous>, transform_indices = @transform_6, window_bounds = array<i64: 8, 128>}]} {
    %0 = tpu.iota {dimensions = array<i32: 1>} : vector<1x8xi32>
    %c8_i32 = arith.constant 8 : i32
    %1 = vector.broadcast %c8_i32 : i32 to vector<1x8xi32>
    %2 = arith.cmpi slt, %0, %1 : vector<1x8xi32>
    %3 = arith.extui %2 : vector<1x8xi1> to vector<1x8xi32>
    %4 = arith.sitofp %3 : vector<1x8xi32> to vector<1x8xf32>
    %c0 = arith.constant 0 : index
    %c0_0 = arith.constant 0 : index
    %5 = vector.load %arg1[%c0, %c0_0] : memref<8x16xf32, #tpu.memory_space<vmem>>, vector<8x16xf32>
    %c0_1 = arith.constant 0 : index
    %c0_2 = arith.constant 0 : index
    %6 = vector.load %arg2[%c0_1, %c0_2] : memref<16x32xf32, #tpu.memory_space<vmem>>, vector<16x32xf32>
    %cst = arith.constant dense<0.000000e+00> : vector<8x32xf32>
    %7 = tpu.matmul %5, %6, %cst {dimension_numbers = #tpu.dot_dimension_numbers<[1], [0], [0], [1], [0, 0, 1, 1], [], []>} : vector<8x16xf32>, vector<16x32xf32>, vector<8x32xf32> -> vector<8x32xf32>
    %cst_3 = arith.constant dense<0.000000e+00> : vector<1x32xf32>
    %8 = tpu.matmul %4, %7, %cst_3 {dimension_numbers = #tpu.dot_dimension_numbers<[1], [0], [0], [1], [0, 0, 1, 1], [], []>} : vector<1x8xf32>, vector<8x32xf32>, vector<1x32xf32> -> vector<1x32xf32>
    %9 = arith.mulf %7, %7 : vector<8x32xf32>
    %cst_4 = arith.constant dense<0.000000e+00> : vector<1x32xf32>
    %10 = tpu.matmul %4, %9, %cst_4 {dimension_numbers = #tpu.dot_dimension_numbers<[1], [0], [0], [1], [0, 0, 1, 1], [], []>} : vector<1x8xf32>, vector<8x32xf32>, vector<1x32xf32> -> vector<1x32xf32>
    %cst_5 = arith.constant 1.250000e-01 : f32
    %11 = vector.broadcast %cst_5 : f32 to vector<1x32xf32>
    %12 = arith.mulf %8, %11 : vector<1x32xf32>
    %cst_6 = arith.constant 1.250000e-01 : f32
    %13 = vector.broadcast %cst_6 : f32 to vector<1x32xf32>
    %14 = arith.mulf %10, %13 : vector<1x32xf32>
    %15 = arith.mulf %12, %12 : vector<1x32xf32>
    %16 = arith.subf %14, %15 : vector<1x32xf32>
    %c0_7 = arith.constant 0 : index
    %c0_8 = arith.constant 0 : index
    %17 = vector.load %arg5[%c0_7, %c0_8] : memref<4x32xf32, #tpu.memory_space<vmem>>, vector<1x32xf32>
    %c1 = arith.constant 1 : index
    %c0_9 = arith.constant 0 : index
    %18 = vector.load %arg5[%c1, %c0_9] : memref<4x32xf32, #tpu.memory_space<vmem>>, vector<1x32xf32>
    %19 = vector.broadcast %12 : vector<1x32xf32> to vector<8x32xf32>
    %20 = arith.subf %7, %19 : vector<8x32xf32>
    %cst_10 = arith.constant 9.99999974E-6 : f32
    %21 = vector.broadcast %cst_10 : f32 to vector<1x32xf32>
    %22 = arith.addf %16, %21 : vector<1x32xf32>
    %23 = math.rsqrt %22 : vector<1x32xf32>
    %24 = arith.mulf %23, %17 : vector<1x32xf32>
    %25 = vector.broadcast %24 : vector<1x32xf32> to vector<8x32xf32>
    %26 = arith.mulf %20, %25 : vector<8x32xf32>
    %27 = vector.broadcast %18 : vector<1x32xf32> to vector<8x32xf32>
    %28 = arith.addf %26, %27 : vector<8x32xf32>
    %cst_11 = arith.constant 0.000000e+00 : f32
    %29 = vector.broadcast %cst_11 : f32 to vector<8x32xf32>
    %30 = arith.cmpf ogt, %28, %29 : vector<8x32xf32>
    %cst_12 = arith.constant 0.00999999977 : f32
    %31 = vector.broadcast %cst_12 : f32 to vector<8x32xf32>
    %32 = arith.mulf %31, %28 : vector<8x32xf32>
    %33 = arith.select %30, %28, %32 : vector<8x32xi1>, vector<8x32xf32>
    %c0_13 = arith.constant 0 : index
    %c0_14 = arith.constant 0 : index
    %34 = vector.load %arg3[%c0_13, %c0_14] : memref<32x32xf32, #tpu.memory_space<vmem>>, vector<32x32xf32>
    %cst_15 = arith.constant dense<0.000000e+00> : vector<8x32xf32>
    %35 = tpu.matmul %33, %34, %cst_15 {dimension_numbers = #tpu.dot_dimension_numbers<[1], [0], [0], [1], [0, 0, 1, 1], [], []>} : vector<8x32xf32>, vector<32x32xf32>, vector<8x32xf32> -> vector<8x32xf32>
    %cst_16 = arith.constant dense<0.000000e+00> : vector<1x32xf32>
    %36 = tpu.matmul %4, %35, %cst_16 {dimension_numbers = #tpu.dot_dimension_numbers<[1], [0], [0], [1], [0, 0, 1, 1], [], []>} : vector<1x8xf32>, vector<8x32xf32>, vector<1x32xf32> -> vector<1x32xf32>
    %37 = arith.mulf %35, %35 : vector<8x32xf32>
    %cst_17 = arith.constant dense<0.000000e+00> : vector<1x32xf32>
    %38 = tpu.matmul %4, %37, %cst_17 {dimension_numbers = #tpu.dot_dimension_numbers<[1], [0], [0], [1], [0, 0, 1, 1], [], []>} : vector<1x8xf32>, vector<8x32xf32>, vector<1x32xf32> -> vector<1x32xf32>
    %cst_18 = arith.constant 1.250000e-01 : f32
    %39 = vector.broadcast %cst_18 : f32 to vector<1x32xf32>
    %40 = arith.mulf %36, %39 : vector<1x32xf32>
    %cst_19 = arith.constant 1.250000e-01 : f32
    %41 = vector.broadcast %cst_19 : f32 to vector<1x32xf32>
    %42 = arith.mulf %38, %41 : vector<1x32xf32>
    %43 = arith.mulf %40, %40 : vector<1x32xf32>
    %44 = arith.subf %42, %43 : vector<1x32xf32>
    %c2 = arith.constant 2 : index
    %c0_20 = arith.constant 0 : index
    %45 = vector.load %arg5[%c2, %c0_20] : memref<4x32xf32, #tpu.memory_space<vmem>>, vector<1x32xf32>
    %c3 = arith.constant 3 : index
    %c0_21 = arith.constant 0 : index
    %46 = vector.load %arg5[%c3, %c0_21] : memref<4x32xf32, #tpu.memory_space<vmem>>, vector<1x32xf32>
    %47 = vector.broadcast %40 : vector<1x32xf32> to vector<8x32xf32>
    %48 = arith.subf %35, %47 : vector<8x32xf32>
    %cst_22 = arith.constant 9.99999974E-6 : f32
    %49 = vector.broadcast %cst_22 : f32 to vector<1x32xf32>
    %50 = arith.addf %44, %49 : vector<1x32xf32>
    %51 = math.rsqrt %50 : vector<1x32xf32>
    %52 = arith.mulf %51, %45 : vector<1x32xf32>
    %53 = vector.broadcast %52 : vector<1x32xf32> to vector<8x32xf32>
    %54 = arith.mulf %48, %53 : vector<8x32xf32>
    %55 = vector.broadcast %46 : vector<1x32xf32> to vector<8x32xf32>
    %56 = arith.addf %54, %55 : vector<8x32xf32>
    %cst_23 = arith.constant 0.000000e+00 : f32
    %57 = vector.broadcast %cst_23 : f32 to vector<8x32xf32>
    %58 = arith.cmpf ogt, %56, %57 : vector<8x32xf32>
    %cst_24 = arith.constant 0.00999999977 : f32
    %59 = vector.broadcast %cst_24 : f32 to vector<8x32xf32>
    %60 = arith.mulf %59, %56 : vector<8x32xf32>
    %61 = arith.select %58, %56, %60 : vector<8x32xi1>, vector<8x32xf32>
    %c0_25 = arith.constant 0 : index
    %c0_26 = arith.constant 0 : index
    %62 = vector.load %arg4[%c0_25, %c0_26] : memref<32x128xf32, #tpu.memory_space<vmem>>, vector<32x128xf32>
    %cst_27 = arith.constant dense<0.000000e+00> : vector<8x128xf32>
    %63 = tpu.matmul %61, %62, %cst_27 {dimension_numbers = #tpu.dot_dimension_numbers<[1], [0], [0], [1], [0, 0, 1, 1], [], []>} : vector<8x32xf32>, vector<32x128xf32>, vector<8x128xf32> -> vector<8x128xf32>
    %c0_28 = arith.constant 0 : index
    %c0_29 = arith.constant 0 : index
    %64 = vector.load %arg6[%c0_28, %c0_29] : memref<1x128xf32, #tpu.memory_space<vmem>>, vector<1x128xf32>
    %65 = vector.broadcast %64 : vector<1x128xf32> to vector<8x128xf32>
    %66 = arith.addf %63, %65 : vector<8x128xf32>
    %cst_30 = arith.constant dense<0xFF800000> : vector<8xf32>
    %67 = vector.multi_reduction <maximumf>, %66, %cst_30 [1] : vector<8x128xf32> to vector<8xf32>
    %68 = vector.shape_cast %67 : vector<8xf32> to vector<8x1xf32>
    %69 = vector.broadcast %68 : vector<8x1xf32> to vector<8x128xf32>
    %70 = arith.subf %66, %69 : vector<8x128xf32>
    %71 = math.exp %70 : vector<8x128xf32>
    %cst_31 = arith.constant dense<0.000000e+00> : vector<8xf32>
    %72 = vector.multi_reduction <add>, %71, %cst_31 [1] : vector<8x128xf32> to vector<8xf32>
    %73 = vector.shape_cast %72 : vector<8xf32> to vector<8x1xf32>
    %74 = tpu.reciprocal %73 {approx = true} : vector<8x1xf32> -> vector<8x1xf32>
    %75 = arith.mulf %73, %74 : vector<8x1xf32>
    %cst_32 = arith.constant 2.000000e+00 : f32
    %76 = vector.broadcast %cst_32 : f32 to vector<8x1xf32>
    %77 = arith.subf %76, %75 : vector<8x1xf32>
    %78 = arith.mulf %74, %77 : vector<8x1xf32>
    %79 = vector.broadcast %78 : vector<8x1xf32> to vector<8x128xf32>
    %80 = arith.mulf %71, %79 : vector<8x128xf32>
    %c0_33 = arith.constant 0 : index
    %c0_34 = arith.constant 0 : index
    %81 = vector.load %arg7[%c0_33, %c0_34] : memref<8x128xf32, #tpu.memory_space<vmem>>, vector<8x128xf32>
    tpu.vector_store %arg7[%c0_33, %c0_34], %80 {strides = array<i32>} : memref<8x128xf32, #tpu.memory_space<vmem>>, vector<8x128xf32>,
    return
  }
  func.func @transform_0(%arg0: i32) -> (i32, i32) {
    %c0_i32 = arith.constant 0 : i32
    %c0_i32_0 = arith.constant 0 : i32
    %c0_i32_1 = arith.constant 0 : i32
    return %c0_i32, %c0_i32_0 : i32, i32
  }
  func.func @transform_1(%arg0: i32) -> (i32, i32) {
    %c0_i32 = arith.constant 0 : i32
    %c0_i32_0 = arith.constant 0 : i32
    %c0_i32_1 = arith.constant 0 : i32
    return %c0_i32, %c0_i32_0 : i32, i32
  }
  func.func @transform_2(%arg0: i32) -> (i32, i32) {
    %c0_i32 = arith.constant 0 : i32
    %c0_i32_0 = arith.constant 0 : i32
    %c0_i32_1 = arith.constant 0 : i32
    return %c0_i32, %c0_i32_0 : i32, i32
  }
  func.func @transform_3(%arg0: i32) -> (i32, i32) {
    %c0_i32 = arith.constant 0 : i32
    %c0_i32_0 = arith.constant 0 : i32
    %c0_i32_1 = arith.constant 0 : i32
    return %c0_i32, %c0_i32_0 : i32, i32
  }
  func.func @transform_4(%arg0: i32) -> (i32, i32) {
    %c0_i32 = arith.constant 0 : i32
    %c0_i32_0 = arith.constant 0 : i32
    %c0_i32_1 = arith.constant 0 : i32
    return %c0_i32, %c0_i32_0 : i32, i32
  }
  func.func @transform_5(%arg0: i32) -> (i32, i32) {
    %c0_i32 = arith.constant 0 : i32
    %c0_i32_0 = arith.constant 0 : i32
    %c0_i32_1 = arith.constant 0 : i32
    return %c0_i32, %c0_i32_0 : i32, i32
  }
  func.func @transform_6(%arg0: i32) -> (i32, i32) {
    %c0_i32 = arith.constant 0 : i32
    %c0_i32_0 = arith.constant 0 : i32
    %c0_i32_1 = arith.constant 0 : i32
    return %c0_i32, %c0_i32_0 : i32, i32
  }
}

</mosaic_0001>

<llo_original>
// kernel: tpu_custom_call.1
$region0: #{tpu_custom_call.1}
  #allocation0 [shape = 'u32[]', space=smem, size = 0x4, offset = 0x4, fixed_abs, tag = 'smem constant byte address 0x4 - core index']
  #allocation1 [shape = 'u32[72,128]{1,0:T(1,128)}', space=vmem, size = 0x9000, scoped, tag = 'internal scratch']
  %s0 = inlined_call_operand.hbm [shape: f32[8,16], index: 0, kind: input, shape index: {}]
  %s1 = inlined_call_operand.hbm [shape: f32[16,32], index: 1, kind: input, shape index: {}]
  %s2 = inlined_call_operand.hbm [shape: f32[32,32], index: 2, kind: input, shape index: {}]
  %s3 = inlined_call_operand.hbm [shape: f32[32,128], index: 3, kind: input, shape index: {}]
  %s4 = inlined_call_operand.hbm [shape: f32[4,32], index: 4, kind: input, shape index: {}]
  %s5 = inlined_call_operand.vmem [shape: f32[1,128], index: 5, kind: input, shape index: {}]
  %s6 = inlined_call_operand.hbm [shape: f32[8,128], index: 6, kind: output, shape index: {}]
  %s7 = sld [smem:[#allocation0]]
  $region54: #{tpu_custom_call.1} parent=0
    _
  %s9 = ssub.s32 1, %s7
  %s10 = scalar_select 0, %s9, %s7
  $region1: #{tpu_custom_call.1} parent=0
    #allocation2 [shape = 'u8[4096]{0}', space=vmem, size = 0x1000, scoped, tag = 'input window, operand 0, single buffered']
    #allocation3 [shape = 's32[1]{0}', space=sflag, size = 0x4, scoped, tag = 'scoped memory for tpu_custom_call.1']
    #allocation4 [shape = 's32[1]{0}', space=sflag, size = 0x4, scoped, tag = 'scoped memory for tpu_custom_call.1']
    #allocation5 [shape = 'u8[8192]{0}', space=vmem, size = 0x2000, scoped, tag = 'input window, operand 1, single buffered']
    #allocation6 [shape = 's32[1]{0}', space=sflag, size = 0x4, scoped, tag = 'scoped memory for tpu_custom_call.1']
    #allocation7 [shape = 'u8[16384]{0}', space=vmem, size = 0x4000, scoped, tag = 'input window, operand 2, single buffered']
    #allocation8 [shape = 'u8[16384]{0}', space=vmem, size = 0x4000, scoped, tag = 'input window, operand 3, single buffered']
    #allocation9 [shape = 's32[1]{0}', space=sflag, size = 0x4, scoped, tag = 'scoped memory for tpu_custom_call.1']
    #allocation10 [shape = 'u8[2048]{0}', space=vmem, size = 0x800, scoped, tag = 'input window, operand 4, single buffered']
    #allocation11 [shape = 'u8[4096]{0}', space=vmem, size = 0x1000, scoped, tag = 'output window, operand 0, single buffered']
    %11 = vsyncpa [#allocation3], 0
    %12 = vsyncpa [#allocation6], 0
    %13 = vsyncpa [#allocation9], 0
    %14 = vsyncpa [#allocation4], 0
    // Predicated region
    $region2: #{tpu_custom_call.1} parent=1 // pred_check
      _
    $region3: #{tpu_custom_call.1} parent=1 // pred_check_branch
      %16 = sbr.rel (0) target = $region5
    $region4: #{tpu_custom_call.1} parent=1 // pred_region
      %18 = vsyncadd [#allocation3], 0
      %s20 = sshll.u32 %s0, 4
      %s21 = int_to_ptr.hbm [resolvable:$true] %s20
      %s22 = sshll.u32 [#allocation2], 4
      %s23 = int_to_ptr.vmem [resolvable:$true] %s22
      %25 = dma.hbm_to_vmem [thread:$0]  %s21, 128, %s23, [#allocation3]
    $region5: #{tpu_custom_call.1} parent=1 // pred_fallthru
      _
    // Predicated region
    $region6: #{tpu_custom_call.1} parent=1 // pred_check
      _
    $region7: #{tpu_custom_call.1} parent=1 // pred_check_branch
      %27 = sbr.rel (0) target = $region9
    $region8: #{tpu_custom_call.1} parent=1 // pred_region
      %29 = vsyncadd [#allocation6], 0
      %s30 = sshll.u32 %s1, 4
      %s31 = int_to_ptr.hbm [resolvable:$true] %s30
      %s32 = sshll.u32 [#allocation5], 4
      %s33 = int_to_ptr.vmem [resolvable:$true] %s32
      %38 = dma.hbm_to_vmem [thread:$0]  %s31, 256, %s33, [#allocation6], 128, 128, 8
    $region9: #{tpu_custom_call.1} parent=1 // pred_fallthru
      _
    // Predicated region
    $region10: #{tpu_custom_call.1} parent=1 // pred_check
      _
    $region11: #{tpu_custom_call.1} parent=1 // pred_check_branch
      %40 = sbr.rel (0) target = $region13
    $region12: #{tpu_custom_call.1} parent=1 // pred_region
      %42 = vsyncadd [#allocation6], 0
      %s43 = sshll.u32 %s2, 4
      %s44 = int_to_ptr.hbm [resolvable:$true] %s43
      %s45 = sshll.u32 [#allocation7], 4
      %s46 = int_to_ptr.vmem [resolvable:$true] %s45
      %51 = dma.hbm_to_vmem [thread:$0]  %s44, 512, %s46, [#allocation6], 128, 128, 8
    $region13: #{tpu_custom_call.1} parent=1 // pred_fallthru
      _
    // Predicated region
    $region14: #{tpu_custom_call.1} parent=1 // pred_check
      _
    $region15: #{tpu_custom_call.1} parent=1 // pred_check_branch
      %53 = sbr.rel (0) target = $region17
    $region16: #{tpu_custom_call.1} parent=1 // pred_region
      %55 = vsyncadd [#allocation9], 0
      %s56 = sshll.u32 %s3, 4
      %s57 = int_to_ptr.hbm [resolvable:$true] %s56
      %s58 = sshll.u32 [#allocation8], 4
      %s59 = int_to_ptr.vmem [resolvable:$true] %s58
      %64 = dma.hbm_to_vmem [thread:$0]  %s57, 512, %s59, [#allocation9], 128, 128, 8
    $region17: #{tpu_custom_call.1} parent=1 // pred_fallthru
      _
    // Predicated region
    $region18: #{tpu_custom_call.1} parent=1 // pred_check
      _
    $region19: #{tpu_custom_call.1} parent=1 // pred_check_branch
      %66 = sbr.rel (0) target = $region21
    $region20: #{tpu_custom_call.1} parent=1 // pred_region
      %68 = vsyncadd [#allocation9], 0
      %s70 = sshll.u32 %s4, 4
      %s71 = int_to_ptr.hbm [resolvable:$true] %s70
      %s72 = sshll.u32 [#allocation10], 4
      %s73 = int_to_ptr.vmem [resolvable:$true] %s72
      %75 = dma.hbm_to_vmem [thread:$0]  %s71, 64, %s73, [#allocation9]
    $region21: #{tpu_custom_call.1} parent=1 // pred_fallthru
      _
    // Predicated region
    $region22: #{tpu_custom_call.1} parent=1 // pred_check
      _
    $region23: #{tpu_custom_call.1} parent=1 // pred_check_branch
      %77 = sbr.rel (0) target = $region25
    $region24: #{tpu_custom_call.1} parent=1 // pred_region
      _
    $region25: #{tpu_custom_call.1} parent=1 // pred_fallthru
      _
    // Predicated region
    $region26: #{tpu_custom_call.1} parent=1 // pred_check
      _
    $region27: #{tpu_custom_call.1} parent=1 // pred_check_branch
      %79 = sbr.rel (0) target = $region29
    $region28: #{tpu_custom_call.1} parent=1 // pred_region
      %81 = dma.done [#allocation3], 128
    $region29: #{tpu_custom_call.1} parent=1 // pred_fallthru
      _
    // Predicated region
    $region30: #{tpu_custom_call.1} parent=1 // pred_check
      _
    $region31: #{tpu_custom_call.1} parent=1 // pred_check_branch
      %83 = sbr.rel (0) target = $region33
    $region32: #{tpu_custom_call.1} parent=1 // pred_region
      %85 = dma.done [#allocation6], 256
    $region33: #{tpu_custom_call.1} parent=1 // pred_fallthru
      _
    // Predicated region
    $region34: #{tpu_custom_call.1} parent=1 // pred_check
      _
    $region35: #{tpu_custom_call.1} parent=1 // pred_check_branch
      %87 = sbr.rel (0) target = $region37
    $region36: #{tpu_custom_call.1} parent=1 // pred_region
      %89 = dma.done [#allocation6], 512
    $region37: #{tpu_custom_call.1} parent=1 // pred_fallthru
      _
    // Predicated region
    $region38: #{tpu_custom_call.1} parent=1 // pred_check
      _
    $region39: #{tpu_custom_call.1} parent=1 // pred_check_branch
      %91 = sbr.rel (0) target = $region41
    $region40: #{tpu_custom_call.1} parent=1 // pred_region
      %93 = dma.done [#allocation9], 512
    $region41: #{tpu_custom_call.1} parent=1 // pred_fallthru
      _
    // Predicated region
    $region42: #{tpu_custom_call.1} parent=1 // pred_check
      _
    $region43: #{tpu_custom_call.1} parent=1 // pred_check_branch
      %95 = sbr.rel (0) target = $region45
    $region44: #{tpu_custom_call.1} parent=1 // pred_region
      %97 = dma.done [#allocation9], 64
    $region45: #{tpu_custom_call.1} parent=1 // pred_fallthru
      _
    %v98 = vlaneseq
    %v99 = vand.u32 %v98, 127
    %vm100 = vcmp.lt.s32.totalorder %v99, 8
    %v101 = vsel %vm100, 1, 0
    %v102 = vcvt.s32.f32 %v101
    %v103 = vld [vmem:[#allocation2] sm:$0xff]
    %v104 = vld [vmem:[#allocation5] sm:$0xff]
    %v105 = vld [vmem:[#allocation5 + $0x8] sm:$0xff]
    %vm106 = vcmask 130048
    %v108 = vsel %vm106, %v103, 0
    %110 = vmatpush.msra.mxu0 0.0
    %111 = vmatpush.msra.mxu0 0.0
    %112 = vmatpush.msra.mxu0 0.0
    %113 = vmatpush.msra.mxu0 0.0
    %114 = vmatpush.msra.mxu0 0.0
    %115 = vmatpush.msra.mxu0 0.0
    %116 = vmatpush.msra.mxu0 0.0
    %117 = vmatpush.msra.mxu0 0.0
    %118 = vmatpush.msra.mxu0 0.0
    %119 = vmatpush.msra.mxu0 0.0
    %120 = vmatpush.msra.mxu0 0.0
    %121 = vmatpush.msra.mxu0 0.0
    %122 = vmatpush.msra.mxu0 0.0
    %123 = vmatpush.msra.mxu0 0.0
    %124 = vmatpush.msra.mxu0 %v105
    %125 = vmatpush.msra.mxu0 %v104
    %126 = vmatmul.f32.gmra.mxu0 %v108
    %v127 = vpop.f32.mrf.mxu0
    %v128 = vadd.f32 0.0, %v127
    %129 = vdwg.mxu0
    %vm130 = vcmask 64512
    %v132 = vsel %vm130, %v102, 0
    %134 = vmatpush.msra.mxu0 0.0
    %135 = vmatpush.msra.mxu0 0.0
    %136 = vmatpush.msra.mxu0 0.0
    %137 = vmatpush.msra.mxu0 0.0
    %138 = vmatpush.msra.mxu0 0.0
    %139 = vmatpush.msra.mxu0 0.0
    %140 = vmatpush.msra.mxu0 0.0
    %141 = vmatpush.msra.mxu0 0.0
    %142 = vmatpush.msra.mxu0 0.0
    %143 = vmatpush.msra.mxu0 0.0
    %144 = vmatpush.msra.mxu0 0.0
    %145 = vmatpush.msra.mxu0 0.0
    %146 = vmatpush.msra.mxu0 0.0
    %147 = vmatpush.msra.mxu0 0.0
    %148 = vmatpush.msra.mxu0 0.0
    %149 = vmatpush.msra.mxu0 %v128
    %150 = vmatmul.f32.gmra.mxu0 %v132
    %v151 = vpop.f32.mrf.mxu0
    %v152 = vadd.f32 0.0, %v151
    %153 = vdwg.mxu0
    %v154 = vmul.f32 %v128, %v128
    %155 = vmatpush.msra.mxu0 0.0
    %156 = vmatpush.msra.mxu0 0.0
    %157 = vmatpush.msra.mxu0 0.0
    %158 = vmatpush.msra.mxu0 0.0
    %159 = vmatpush.msra.mxu0 0.0
    %160 = vmatpush.msra.mxu0 0.0
    %161 = vmatpush.msra.mxu0 0.0
    %162 = vmatpush.msra.mxu0 0.0
    %163 = vmatpush.msra.mxu0 0.0
    %164 = vmatpush.msra.mxu0 0.0
    %165 = vmatpush.msra.mxu0 0.0
    %166 = vmatpush.msra.mxu0 0.0
    %167 = vmatpush.msra.mxu0 0.0
    %168 = vmatpush.msra.mxu0 0.0
    %169 = vmatpush.msra.mxu0 0.0
    %170 = vmatpush.msra.mxu0 %v154
    %171 = vmatmul.f32.gmra.mxu0 %v132
    %v172 = vpop.f32.mrf.mxu0
    %v173 = vadd.f32 0.0, %v172
    %174 = vdwg.mxu0
    %v175 = vmul.f32 %v152, 0.125
    %v176 = vmul.f32 %v173, 0.125
    %v177 = vmul.f32 %v175, %v175
    %v178 = vsub.f32 %v176, %v177
    %v179 = vld [vmem:[#allocation10] sm:$0x1]
    %v180 = vld [vmem:[#allocation10 + $0x1] sm:$0x1]
    %v181 = vperm.slane %v175, 0
    %v182 = vsub.f32 %v128, %v181
    %v183 = vadd.f32 %v178, 1e-05
    %v184 = vrsqrt.pop %v183
    %v185 = vmul.f32 %v184, %v183
    %v186 = vmul.f32 %v185, %v184
    %v187 = vmul.f32 0.5, %v186
    %v188 = vsub.f32 1.5, %v187
    %v189 = vmul.f32 %v184, %v188
    %vm190 = vweird.f32 %v183
    %vm191 = vweird.f32 %v184
    %vm192 = vmor %vm190, %vm191
    %v193 = vsel %vm192, %v184, %v189
    %v194 = vmul.f32 %v193, %v179
    %v195 = vperm.slane %v194, 0
    %v196 = vmul.f32 %v182, %v195
    %v197 = vperm.slane %v180, 0
    %v198 = vadd.f32 %v196, %v197
    %vm199 = vcmp.gt.f32.partialorder %v198, 0.0
    %v200 = vmul.f32 %v198, 0.01
    %v201 = vsel %vm199, %v198, %v200
    %v202 = vld [vmem:[#allocation7] sm:$0xff]
    %v203 = vld [vmem:[#allocation7 + $0x8] sm:$0xff]
    %v204 = vld [vmem:[#allocation7 + $0x10] sm:$0xff]
    %v205 = vld [vmem:[#allocation7 + $0x18] sm:$0xff]
    %vm206 = vcmask 261120
    %v208 = vsel %vm206, %v201, 0
    %210 = vmatpush.msra.mxu0 0.0
    %211 = vmatpush.msra.mxu0 0.0
    %212 = vmatpush.msra.mxu0 0.0
    %213 = vmatpush.msra.mxu0 0.0
    %214 = vmatpush.msra.mxu0 0.0
    %215 = vmatpush.msra.mxu0 0.0
    %216 = vmatpush.msra.mxu0 0.0
    %217 = vmatpush.msra.mxu0 0.0
    %218 = vmatpush.msra.mxu0 0.0
    %219 = vmatpush.msra.mxu0 0.0
    %220 = vmatpush.msra.mxu0 0.0
    %221 = vmatpush.msra.mxu0 0.0
    %222 = vmatpush.msra.mxu0 %v205
    %223 = vmatpush.msra.mxu0 %v204
    %224 = vmatpush.msra.mxu0 %v203
    %225 = vmatpush.msra.mxu0 %v202
    %226 = vmatmul.f32.gmra.mxu0 %v208
    %v227 = vpop.f32.mrf.mxu0
    %v228 = vadd.f32 0.0, %v227
    %229 = vdwg.mxu0
    %230 = vmatpush.msra.mxu0 0.0
    %231 = vmatpush.msra.mxu0 0.0
    %232 = vmatpush.msra.mxu0 0.0
    %233 = vmatpush.msra.mxu0 0.0
    %234 = vmatpush.msra.mxu0 0.0
    %235 = vmatpush.msra.mxu0 0.0
    %236 = vmatpush.msra.mxu0 0.0
    %237 = vmatpush.msra.mxu0 0.0
    %238 = vmatpush.msra.mxu0 0.0
    %239 = vmatpush.msra.mxu0 0.0
    %240 = vmatpush.msra.mxu0 0.0
    %241 = vmatpush.msra.mxu0 0.0
    %242 = vmatpush.msra.mxu0 0.0
    %243 = vmatpush.msra.mxu0 0.0
    %244 = vmatpush.msra.mxu0 0.0
    %245 = vmatpush.msra.mxu0 %v228
    %246 = vmatmul.f32.gmra.mxu0 %v132
    %v247 = vpop.f32.mrf.mxu0
    %v248 = vadd.f32 0.0, %v247
    %249 = vdwg.mxu0
    %v250 = vmul.f32 %v228, %v228
    %251 = vmatpush.msra.mxu0 0.0
    %252 = vmatpush.msra.mxu0 0.0
    %253 = vmatpush.msra.mxu0 0.0
    %254 = vmatpush.msra.mxu0 0.0
    %255 = vmatpush.msra.mxu0 0.0
    %256 = vmatpush.msra.mxu0 0.0
    %257 = vmatpush.msra.mxu0 0.0
    %258 = vmatpush.msra.mxu0 0.0
    %259 = vmatpush.msra.mxu0 0.0
    %260 = vmatpush.msra.mxu0 0.0
    %261 = vmatpush.msra.mxu0 0.0
    %262 = vmatpush.msra.mxu0 0.0
    %263 = vmatpush.msra.mxu0 0.0
    %264 = vmatpush.msra.mxu0 0.0
    %265 = vmatpush.msra.mxu0 0.0
    %266 = vmatpush.msra.mxu0 %v250
    %267 = vmatmul.f32.gmra.mxu0 %v132
    %v268 = vpop.f32.mrf.mxu0
    %v269 = vadd.f32 0.0, %v268
    %270 = vdwg.mxu0
    %v271 = vmul.f32 %v248, 0.125
    %v272 = vmul.f32 %v269, 0.125
    %v273 = vmul.f32 %v271, %v271
    %v274 = vsub.f32 %v272, %v273
    %v275 = vld [vmem:[#allocation10 + $0x2] sm:$0x1]
    %v276 = vld [vmem:[#allocation10 + $0x3] sm:$0x1]
    %v277 = vperm.slane %v271, 0
    %v278 = vsub.f32 %v228, %v277
    %v279 = vadd.f32 %v274, 1e-05
    %v280 = vrsqrt.pop %v279
    %v281 = vmul.f32 %v280, %v279
    %v282 = vmul.f32 %v281, %v280
    %v283 = vmul.f32 0.5, %v282
    %v284 = vsub.f32 1.5, %v283
    %v285 = vmul.f32 %v280, %v284
    %vm286 = vweird.f32 %v279
    %vm287 = vweird.f32 %v280
    %vm288 = vmor %vm286, %vm287
    %v289 = vsel %vm288, %v280, %v285
    %v290 = vmul.f32 %v289, %v275
    %v291 = vperm.slane %v290, 0
    %v292 = vmul.f32 %v278, %v291
    %v293 = vperm.slane %v276, 0
    %v294 = vadd.f32 %v292, %v293
    %vm295 = vcmp.gt.f32.partialorder %v294, 0.0
    %v296 = vmul.f32 %v294, 0.01
    %v297 = vsel %vm295, %v294, %v296
    %v298 = vld [vmem:[#allocation8] sm:$0xff]
    %v299 = vld [vmem:[#allocation8 + $0x8] sm:$0xff]
    %v300 = vld [vmem:[#allocation8 + $0x10] sm:$0xff]
    %v301 = vld [vmem:[#allocation8 + $0x18] sm:$0xff]
    %v302 = vld [vmem:[%s5] sm:$0x1]
    %v304 = vperm.slane %v302, 0
    %v307 = vsel %vm206, %v297, 0
    %309 = vmatpush.msra.mxu0 0.0
    %310 = vmatpush.msra.mxu0 0.0
    %311 = vmatpush.msra.mxu0 0.0
    %312 = vmatpush.msra.mxu0 0.0
    %313 = vmatpush.msra.mxu0 0.0
    %314 = vmatpush.msra.mxu0 0.0
    %315 = vmatpush.msra.mxu0 0.0
    %316 = vmatpush.msra.mxu0 0.0
    %317 = vmatpush.msra.mxu0 0.0
    %318 = vmatpush.msra.mxu0 0.0
    %319 = vmatpush.msra.mxu0 0.0
    %320 = vmatpush.msra.mxu0 0.0
    %321 = vmatpush.msra.mxu0 %v301
    %322 = vmatpush.msra.mxu0 %v300
    %323 = vmatpush.msra.mxu0 %v299
    %324 = vmatpush.msra.mxu0 %v298
    %325 = vmatmul.f32.gmra.mxu0 %v307
    %v326 = vpop.f32.mrf.mxu0
    %v327 = vadd.f32 %v304, %v326
    %328 = vdwg.mxu0
    %329 = vmax.xlane.f32.xlu0 %v327
    %v330 = vpop.xlane.xlu0 %329
    %v331 = vsub.f32 %v327, %v330
    %v332 = vmul.f32 %v331, 1.442695
    %v333 = vpow.pop %v332
    %334 = vadd.xlane.f32.xlu0 %v333
    %v335 = vpop.xlane.xlu0 %334
    %v336 = vrcp.pop %v335
    %v337 = vmul.f32 %v335, %v336
    %v338 = vsub.f32 2.0, %v337
    %v339 = vmul.f32 %v336, %v338
    %v340 = vmul.f32 %v333, %v339
    %341 = vst [vmem:[#allocation11] sm:$0xff] %v340
    // Predicated region
    $region46: #{tpu_custom_call.1} parent=1 // pred_check
      _
    $region47: #{tpu_custom_call.1} parent=1 // pred_check_branch
      %343 = sbr.rel (0) target = $region49
    $region48: #{tpu_custom_call.1} parent=1 // pred_region
      %345 = vsyncadd [#allocation4], 0
      %s347 = sshll.u32 [#allocation11], 4
      %s348 = int_to_ptr.vmem [resolvable:$true] %s347
      %s349 = sshll.u32 %s6, 4
      %s350 = int_to_ptr.hbm [resolvable:$true] %s349
      %352 = dma.vmem_to_hbm [thread:$0]  %s348, 128, %s350, [#allocation4]
    $region49: #{tpu_custom_call.1} parent=1 // pred_fallthru
      _
    // Predicated region
    $region50: #{tpu_custom_call.1} parent=1 // pred_check
      _
    $region51: #{tpu_custom_call.1} parent=1 // pred_check_branch
      %354 = sbr.rel (0) target = $region53
    $region52: #{tpu_custom_call.1} parent=1 // pred_region
      %356 = dma.done [#allocation4], 128
    $region53: #{tpu_custom_call.1} parent=1 // pred_fallthru
      _
    %357 = vsyncpa [#allocation3], 1
    %358 = vsyncpa [#allocation6], 1
    %359 = vsyncpa [#allocation9], 1
    %360 = vsyncpa [#allocation4], 1

</llo_original>
